<compile_context>
chip_gen: v7x
topology: tpu7x:2x2x1
jax: 0.10.0
libtpu: 0.0.40
codegen_flags: <defaults>
</compile_context>

<pallas_src>
import functools

import jax
import jax.numpy as jnp
from jax.experimental import pallas as pl
from jax.experimental.pallas import tpu as pltpu


# --------------------------- Model configuration ---------------------------

VOCAB = 100
MAX_POS = 64
HIDDEN = 32
NUM_HEADS = 4
HEAD_DIM = HIDDEN // NUM_HEADS
FFN = 64
NUM_LAYERS = 2
LN_EPS = 1e-5


# ----------------------------- Pallas kernels ------------------------------

def _ln(x, g, b, eps):
    """LayerNorm over the last (lane) axis on in-register values."""
    mean = jnp.mean(x, axis=-1, keepdims=True)
    var = jnp.mean((x - mean) ** 2, axis=-1, keepdims=True)
    return (x - mean) * jax.lax.rsqrt(var + eps) * g + b


def _layernorm_kernel(x_ref, g_ref, b_ref, o_ref, *, eps):
    o_ref[...] = _ln(x_ref[...], g_ref[...], b_ref[...], eps)


def layernorm(x, gamma, beta, eps=LN_EPS):
    M, H = x.shape
    return pl.pallas_call(
        functools.partial(_layernorm_kernel, eps=eps),
        out_shape=jax.ShapeDtypeStruct((M, H), jnp.float32),
        in_specs=[pl.BlockSpec(memory_space=pltpu.MemorySpace.VMEM)] * 3,
        out_specs=pl.BlockSpec(memory_space=pltpu.MemorySpace.VMEM),
    )(x, gamma.reshape(1, H), beta.reshape(1, H))


def _encoder_layer_kernel(
    x_ref, mask_ref,
    wqkv_ref, bqkv_ref, wo_ref, bo_ref, ln1g_ref, ln1b_ref,
    w1_ref, b1_ref, w2_ref, b2_ref, ln2g_ref, ln2b_ref,
    o_ref, *, num_heads, head_dim, scale, eps):
    """One full RoBERTa encoder layer, fully resident in VMEM/vregs."""
    H = num_heads * head_dim
    x = x_ref[...]                      # (M, H)
    mask = mask_ref[...]                # (M, M) additive (0 / -1e9), block-diag in batch

    # --- fused QKV projection: one MXU call instead of three pallas_calls ---
    qkv = jnp.dot(x, wqkv_ref[...], preferred_element_type=jnp.float32) + bqkv_ref[...]

    # --- per-head attention; heads sliced on the lane axis, statically unrolled ---
    attn_acc = None
    for h in range(num_heads):
        lo = h * head_dim
        q = qkv[:, lo:lo + head_dim]                    # (M, D)
        k = qkv[:, H + lo:H + lo + head_dim]            # (M, D)
        v = qkv[:, 2 * H + lo:2 * H + lo + head_dim]    # (M, D)

        s = jnp.dot(q, k.T, preferred_element_type=jnp.float32) * scale + mask
        s = s - jnp.max(s, axis=-1, keepdims=True)
        p = jnp.exp(s)
        p = p * pl.reciprocal(jnp.sum(p, axis=-1, keepdims=True), approx=True)
        ctx_h = jnp.dot(p, v, preferred_element_type=jnp.float32)        # (M, D)

        # fold the head straight into the output projection: ctx @ Wo == sum_h ctx_h @ Wo[hD:(h+1)D]
        contrib = jnp.dot(ctx_h, wo_ref[lo:lo + head_dim, :],
                          preferred_element_type=jnp.float32)            # (M, H)
        attn_acc = contrib if attn_acc is None else attn_acc + contrib

    attn_out = attn_acc + bo_ref[...]

    # --- residual + LN1 ---
    x = _ln(x + attn_out, ln1g_ref[...], ln1b_ref[...], eps)

    # --- FFN: dense -> exact gelu -> dense, residual + LN2 ---
    h1 = jnp.dot(x, w1_ref[...], preferred_element_type=jnp.float32) + b1_ref[...]
    h1 = jax.nn.gelu(h1, approximate=False)   # HF roberta uses exact gelu
    h2 = jnp.dot(h1, w2_ref[...], preferred_element_type=jnp.float32) + b2_ref[...]

    o_ref[...] = _ln(x + h2, ln2g_ref[...], ln2b_ref[...], eps)


def encoder_layer(x, add_mask, lyr):
    M, H = x.shape
    return pl.pallas_call(
        functools.partial(
            _encoder_layer_kernel,
            num_heads=NUM_HEADS, head_dim=HEAD_DIM,
            scale=1.0 / (HEAD_DIM ** 0.5), eps=LN_EPS),
        out_shape=jax.ShapeDtypeStruct((M, H), jnp.float32),
        in_specs=[pl.BlockSpec(memory_space=pltpu.MemorySpace.VMEM)] * 14,
        out_specs=pl.BlockSpec(memory_space=pltpu.MemorySpace.VMEM),
    )(x, add_mask,
      lyr["wqkv"], lyr["bqkv"], lyr["wo"], lyr["bo"],
      lyr["ln1_g"], lyr["ln1_b"],
      lyr["w1"], lyr["b1"], lyr["w2"], lyr["b2"],
      lyr["ln2_g"], lyr["ln2_b"])


def _head_dense_kernel(x_ref, w_ref, b_ref, o_ref):
    y = jnp.dot(x_ref[...], w_ref[...], preferred_element_type=jnp.float32) + b_ref[...]
    o_ref[...] = jnp.tanh(y)


def head_dense_tanh(x, w, b):
    M, _ = x.shape
    N = w.shape[1]
    return pl.pallas_call(
        _head_dense_kernel,
        out_shape=jax.ShapeDtypeStruct((M, N), jnp.float32),
        in_specs=[pl.BlockSpec(memory_space=pltpu.MemorySpace.VMEM)] * 3,
        out_specs=pl.BlockSpec(memory_space=pltpu.MemorySpace.VMEM),
    )(x, w, b.reshape(1, N))


# --------------------------- Parameter initialization ----------------------

def init_params(key):
    def nrm(k, shape, scale=0.02):
        return scale * jax.random.normal(k, shape, dtype=jnp.float32)

    keys = iter(jax.random.split(key, 8 + NUM_LAYERS * 8))
    p = {
        "word_emb": nrm(next(keys), (VOCAB, HIDDEN)),
        "pos_emb": nrm(next(keys), (MAX_POS, HIDDEN)),
        "emb_ln_g": jnp.ones((HIDDEN,), jnp.float32),
        "emb_ln_b": jnp.zeros((HIDDEN,), jnp.float32),
        "layers": [],
        # RobertaClassificationHead: dense(H,H)+tanh, out_proj(H,1)
        "head_dense_w": nrm(next(keys), (HIDDEN, HIDDEN)),
        "head_dense_b": jnp.zeros((HIDDEN,), jnp.float32),
        "head_out_w": nrm(next(keys), (HIDDEN, 1)),
        "head_out_b": jnp.zeros((1,), jnp.float32),
    }
    for _ in range(NUM_LAYERS):
        lyr = {
            # fused Q|K|V projection weight: (H, 3H)
            "wqkv": nrm(next(keys), (HIDDEN, 3 * HIDDEN)),
            "bqkv": jnp.zeros((1, 3 * HIDDEN), jnp.float32),
            "wo": nrm(next(keys), (HIDDEN, HIDDEN)),
            "bo": jnp.zeros((1, HIDDEN), jnp.float32),
            "ln1_g": jnp.ones((1, HIDDEN), jnp.float32),
            "ln1_b": jnp.zeros((1, HIDDEN), jnp.float32),
            "w1": nrm(next(keys), (HIDDEN, FFN)),
            "b1": jnp.zeros((1, FFN), jnp.float32),
            "w2": nrm(next(keys), (FFN, HIDDEN)),
            "b2": jnp.zeros((1, HIDDEN), jnp.float32),
            "ln2_g": jnp.ones((1, HIDDEN), jnp.float32),
            "ln2_b": jnp.zeros((1, HIDDEN), jnp.float32),
        }
        p["layers"].append(lyr)
    return p


# ------------------------------ Forward pass -------------------------------

def roberta_regressor_forward(params, input_ids, attention_mask):
    B, S = input_ids.shape
    H = HIDDEN
    M = B * S

    # Embeddings (gather is glue, plain JAX), then Pallas layernorm.
    # TODO(synk): HF RoBERTa offsets position ids by padding_idx+1; synthetic model
    #             uses plain arange positions.
    emb = params["word_emb"][input_ids] + params["pos_emb"][jnp.arange(S)][None, :, :]
    x = layernorm(emb.reshape(M, H), params["emb_ln_g"], params["emb_ln_b"])

    # Single (M, M) additive bias: -1e9 for masked-out keys and for cross-batch
    # pairs (gives per-batch attention with all heads/batches in one kernel).
    batch_idx = jnp.arange(M, dtype=jnp.int32) // S
    same_batch = batch_idx[:, None] == batch_idx[None, :]
    key_valid = attention_mask.reshape(M).astype(bool)
    add_mask = jnp.where(same_batch & key_valid[None, :], 0.0, -1e9).astype(jnp.float32)

    # Encoder: one fused pallas_call per layer.
    for lyr in params["layers"]:
        x = encoder_layer(x, add_mask, lyr)

    # RobertaClassificationHead: take <s> (first) token, dense+tanh (Pallas),
    # out_proj (H -> 1) in plain jnp.dot — a dedicated kernel would be pure overhead.
    cls = x.reshape(B, S, H)[:, 0, :]
    cls = head_dense_tanh(cls, params["head_dense_w"], params["head_dense_b"])
    logits = jnp.dot(cls, params["head_out_w"]) + params["head_out_b"]
    # TODO(synk): HF returns a SequenceClassifierOutput dataclass; we return logits only.
    return logits


# ---------------------------------- Main -----------------------------------

if __name__ == "__main__":
    key = jax.random.PRNGKey(0)
    k_param, k_ids = jax.random.split(key)

    params = init_params(k_param)

    B, S = 2, 8
    input_ids = jax.random.randint(k_ids, (B, S), 0, VOCAB, dtype=jnp.int32)
    attention_mask = jnp.array(
        [[1, 1, 1, 1, 1, 1, 1, 1],
         [1, 1, 1, 1, 1, 1, 0, 0]], dtype=jnp.int32)

    logits = roberta_regressor_forward(params, input_ids, attention_mask)
    jax.block_until_ready(logits)

    assert logits.shape == (B, 1) and logits.dtype == jnp.float32
    print("KERNEL_OK")
</pallas_src>

<mosaic_0001>
module attributes {stable_mosaic.version = 11 : i64} {
  func.func @_layernorm_kernel(%arg0: memref<16x32xf32, #tpu.memory_space<vmem>>, %arg1: memref<1x32xf32, #tpu.memory_space<vmem>>, %arg2: memref<1x32xf32, #tpu.memory_space<vmem>>, %arg3: memref<16x32xf32, #tpu.memory_space<vmem>>) attributes {dimension_semantics = [], scalar_prefetch = 0 : i64, scratch_operands = 0 : i64, tpu.core_type = #tpu.core_type<tc>} {
    %c0 = arith.constant 0 : index
    %c0_0 = arith.constant 0 : index
    %0 = vector.load %arg0[%c0, %c0_0] : memref<16x32xf32, #tpu.memory_space<vmem>>, vector<16x32xf32>
    %c0_1 = arith.constant 0 : index
    %c0_2 = arith.constant 0 : index
    %1 = vector.load %arg1[%c0_1, %c0_2] : memref<1x32xf32, #tpu.memory_space<vmem>>, vector<1x32xf32>
    %c0_3 = arith.constant 0 : index
    %c0_4 = arith.constant 0 : index
    %2 = vector.load %arg2[%c0_3, %c0_4] : memref<1x32xf32, #tpu.memory_space<vmem>>, vector<1x32xf32>
    %cst = arith.constant dense<0.000000e+00> : vector<16xf32>
    %3 = vector.multi_reduction <add>, %0, %cst [1] : vector<16x32xf32> to vector<16xf32>
    %4 = vector.shape_cast %3 : vector<16xf32> to vector<16x1xf32>
    %cst_5 = arith.constant 3.200000e+01 : f32
    %5 = vector.broadcast %cst_5 : f32 to vector<16x1xf32>
    %6 = arith.divf %4, %5 : vector<16x1xf32>
    %7 = vector.broadcast %6 : vector<16x1xf32> to vector<16x32xf32>
    %8 = arith.subf %0, %7 : vector<16x32xf32>
    %9 = arith.mulf %8, %8 : vector<16x32xf32>
    %cst_6 = arith.constant dense<0.000000e+00> : vector<16xf32>
    %10 = vector.multi_reduction <add>, %9, %cst_6 [1] : vector<16x32xf32> to vector<16xf32>
    %11 = vector.shape_cast %10 : vector<16xf32> to vector<16x1xf32>
    %cst_7 = arith.constant 3.200000e+01 : f32
    %12 = vector.broadcast %cst_7 : f32 to vector<16x1xf32>
    %13 = arith.divf %11, %12 : vector<16x1xf32>
    %14 = vector.broadcast %6 : vector<16x1xf32> to vector<16x32xf32>
    %15 = arith.subf %0, %14 : vector<16x32xf32>
    %cst_8 = arith.constant 9.99999974E-6 : f32
    %16 = vector.broadcast %cst_8 : f32 to vector<16x1xf32>
    %17 = arith.addf %13, %16 : vector<16x1xf32>
    %18 = math.rsqrt %17 : vector<16x1xf32>
    %19 = vector.broadcast %18 : vector<16x1xf32> to vector<16x32xf32>
    %20 = arith.mulf %15, %19 : vector<16x32xf32>
    %21 = vector.broadcast %1 : vector<1x32xf32> to vector<16x32xf32>
    %22 = arith.mulf %20, %21 : vector<16x32xf32>
    %23 = vector.broadcast %2 : vector<1x32xf32> to vector<16x32xf32>
    %24 = arith.addf %22, %23 : vector<16x32xf32>
    %c0_9 = arith.constant 0 : index
    %c0_10 = arith.constant 0 : index
    %25 = vector.load %arg3[%c0_9, %c0_10] : memref<16x32xf32, #tpu.memory_space<vmem>>, vector<16x32xf32>
    tpu.vector_store %arg3[%c0_9, %c0_10], %24 {strides = array<i32>} : memref<16x32xf32, #tpu.memory_space<vmem>>, vector<16x32xf32>,
    return
  }
}

</mosaic_0001>

<llo_original>
// kernel: tpu_custom_call.1
$region0: #{tpu_custom_call.1}
  #allocation0 [shape = 'u32[]', space=smem, size = 0x4, offset = 0x4, fixed_abs, tag = 'smem constant byte address 0x4 - core index']
  #allocation1 [shape = 'u32[144,128]{1,0:T(1,128)}', space=vmem, size = 0x12000, scoped, tag = 'internal scratch']
  %s0 = inlined_call_operand.hbm [shape: f32[16,32], index: 0, kind: input, shape index: {}]
  %s1 = inlined_call_operand.vmem [shape: f32[1,32], index: 1, kind: input, shape index: {}]
  %s2 = inlined_call_operand.vmem [shape: f32[1,32], index: 2, kind: input, shape index: {}]
  %s3 = inlined_call_operand.hbm [shape: f32[16,32], index: 3, kind: output, shape index: {}]
  %s4 = sld [smem:[#allocation0]]
  $region26: #{tpu_custom_call.1} parent=0
    _
  %s6 = ssub.s32 1, %s4
  %s7 = scalar_select 0, %s6, %s4
  $region1: #{tpu_custom_call.1} parent=0
    #allocation2 [shape = 'u8[8192]{0}', space=vmem, size = 0x2000, scoped, tag = 'input window, operand 0, single buffered']
    #allocation3 [shape = 's32[1]{0}', space=sflag, size = 0x4, scoped, tag = 'scoped memory for tpu_custom_call.1']
    #allocation4 [shape = 's32[1]{0}', space=sflag, size = 0x4, scoped, tag = 'scoped memory for tpu_custom_call.1']
    #allocation5 [shape = 'u8[8192]{0}', space=vmem, size = 0x2000, scoped, tag = 'output window, operand 0, single buffered']
    %8 = vsyncpa [#allocation3], 0
    %9 = vsyncpa [#allocation4], 0
    // Predicated region
    $region2: #{tpu_custom_call.1} parent=1 // pred_check
      _
    $region3: #{tpu_custom_call.1} parent=1 // pred_check_branch
      %11 = sbr.rel (0) target = $region5
    $region4: #{tpu_custom_call.1} parent=1 // pred_region
      %s13 = ssub.s32 256, 256
      %14 = vsyncadd [#allocation3], %s13
      %s15 = sshll.u32 [#allocation2], 4
      %s16 = int_to_ptr.vmem [resolvable:$true] %s15
      %21 = dma.hbm_to_vmem [thread:$0]  %s0, 256, %s16, [#allocation3], 128, 128, 8
    $region5: #{tpu_custom_call.1} parent=1 // pred_fallthru
      _
    // Predicated region
    $region6: #{tpu_custom_call.1} parent=1 // pred_check
      _
    $region7: #{tpu_custom_call.1} parent=1 // pred_check_branch
      %23 = sbr.rel (0) target = $region9
    $region8: #{tpu_custom_call.1} parent=1 // pred_region
      _
    $region9: #{tpu_custom_call.1} parent=1 // pred_fallthru
      _
    // Predicated region
    $region10: #{tpu_custom_call.1} parent=1 // pred_check
      _
    $region11: #{tpu_custom_call.1} parent=1 // pred_check_branch
      %25 = sbr.rel (0) target = $region13
    $region12: #{tpu_custom_call.1} parent=1 // pred_region
      _
    $region13: #{tpu_custom_call.1} parent=1 // pred_fallthru
      _
    // Predicated region
    $region14: #{tpu_custom_call.1} parent=1 // pred_check
      _
    $region15: #{tpu_custom_call.1} parent=1 // pred_check_branch
      %27 = sbr.rel (0) target = $region17
    $region16: #{tpu_custom_call.1} parent=1 // pred_region
      %28 = dma.done [#allocation3], 256
    $region17: #{tpu_custom_call.1} parent=1 // pred_fallthru
      _
    %v29 = vld [vmem:[#allocation2] sm:$0xff]
    %v30 = vld [vmem:[#allocation2 + $0x8] sm:$0xff]
    %v31 = vld [vmem:[%s1] sm:$0x1]
    %v32 = vld [vmem:[%s2] sm:$0x1]
    %vm33 = vcmask 261120
    %v34 = vsel %vm33, %v29, 0.0
    %35 = vadd.xlane.f32.xlu0 %v34
    %v36 = vpop.xlane.xlu0 %35
    %v37 = vsel %vm33, %v30, 0.0
    %38 = vadd.xlane.f32.xlu0 %v37
    %v39 = vpop.xlane.xlu0 %38
    %v40 = vrcp.pop 32.0
    %v41 = vmul.f32 %v36, %v40
    %v42 = vmul.f32 %v39, %v40
    %v43 = vsub.f32 %v29, %v41
    %v44 = vsub.f32 %v30, %v42
    %v45 = vmul.f32 %v43, %v43
    %v46 = vmul.f32 %v44, %v44
    %v47 = vsel %vm33, %v45, 0.0
    %48 = vadd.xlane.f32.xlu0 %v47
    %v49 = vpop.xlane.xlu0 %48
    %v50 = vsel %vm33, %v46, 0.0
    %51 = vadd.xlane.f32.xlu0 %v50
    %v52 = vpop.xlane.xlu0 %51
    %v53 = vmul.f32 %v49, %v40
    %v54 = vmul.f32 %v52, %v40
    %v55 = vadd.f32 %v53, 1e-05
    %v56 = vadd.f32 %v54, 1e-05
    %v57 = vrsqrt.pop %v55
    %v58 = vrsqrt.pop %v56
    %v59 = vmul.f32 %v43, %v57
    %v60 = vmul.f32 %v44, %v58
    %v62 = vlaneseq
    %v63 = vshrl.u32 %v62, 7
    %v64 = vsub.s32 0, %v63
    %v65 = vrot.slane %v31, %v64
    %v67 = vmul.f32 %v59, %v65
    %v68 = vmul.f32 %v60, %v65
    %v70 = vlaneseq
    %v71 = vshrl.u32 %v70, 7
    %v72 = vsub.s32 0, %v71
    %v73 = vrot.slane %v32, %v72
    %v75 = vadd.f32 %v67, %v73
    %v76 = vadd.f32 %v68, %v73
    %77 = vst.msk [vmem:[#allocation5] sm:$0xff] %vm33, %v75
    %78 = vst.msk [vmem:[#allocation5 + $0x8] sm:$0xff] %vm33, %v76
    // Predicated region
    $region18: #{tpu_custom_call.1} parent=1 // pred_check
      _
    $region19: #{tpu_custom_call.1} parent=1 // pred_check_branch
      %80 = sbr.rel (0) target = $region21
    $region20: #{tpu_custom_call.1} parent=1 // pred_region
      %s82 = ssub.s32 256, 256
      %83 = vsyncadd [#allocation4], %s82
      %s84 = sshll.u32 [#allocation5], 4
      %s85 = int_to_ptr.vmem [resolvable:$true] %s84
      %90 = dma.vmem_to_hbm [thread:$0]  %s85, 256, %s3, [#allocation4], 128, 128, 8
    $region21: #{tpu_custom_call.1} parent=1 // pred_fallthru
      _
    // Predicated region
    $region22: #{tpu_custom_call.1} parent=1 // pred_check
      _
    $region23: #{tpu_custom_call.1} parent=1 // pred_check_branch
      %92 = sbr.rel (0) target = $region25
    $region24: #{tpu_custom_call.1} parent=1 // pred_region
      %93 = dma.done [#allocation4], 256
    $region25: #{tpu_custom_call.1} parent=1 // pred_fallthru
      _
    %94 = vsyncpa [#allocation3], 1
    %95 = vsyncpa [#allocation4], 1

</llo_original>
